<compile_context>
chip_gen: v7x
topology: tpu7x:2x2x1
jax: 0.10.0
libtpu: 0.0.40
codegen_flags: <defaults>
</compile_context>

<pallas_src>
import functools

import jax
import jax.numpy as jnp
from jax.experimental import pallas as pl
from jax.experimental.pallas import tpu as pltpu

LANE = 128
SUBLANE = 8


# ----------------------------- Pallas kernel ------------------------------- #

def _fused_graphsage_kernel(*refs, num_sage_layers, relu_flags, has_final_linear,
                            compute_dtype):
    """Fused GraphSAGE2 forward.

    refs layout (all full-array VMEM blocks):
      (a, x, [w_l, w_r, b] * num_sage_layers, [w_out, b_out]?, o)
    Shapes (padded):
      a: (Np, Np)  x: (Np, F0p)
      w_l / w_r: (Fin_p, Fout_p)   b: (1, Fout_p)
      w_out: (Ep, Op)  b_out: (1, Op)   o: (Np, Ocols)
    """
    a_ref, x_ref = refs[0], refs[1]
    o_ref = refs[-1]
    layer_refs = refs[2:-1]

    a = a_ref[...]          # loaded once, stays resident in VMEM, reused per layer
    h = x_ref[...]

    z = None
    for li in range(num_sage_layers):
        w_l = layer_refs[3 * li][...]          # (Fin_p, Fout_p), compute_dtype
        w_r = layer_refs[3 * li + 1][...]      # (Fin_p, Fout_p), compute_dtype
        b = layer_refs[3 * li + 2][...]        # (1, Fout_p), float32

        # Neighborhood aggregation on the MXU: (Np, Np) @ (Np, Fin_p), f32 acc.
        agg = jnp.dot(a, h, preferred_element_type=jnp.float32).astype(compute_dtype)

        # Two dots against the separate weight halves (no concatenate copy).
        z = (jnp.dot(agg, w_l, preferred_element_type=jnp.float32)
             + jnp.dot(h, w_r, preferred_element_type=jnp.float32)
             + b)

        if relu_flags[li]:
            z = jnp.maximum(z, 0.0)
            # dropout: eval-mode identity (see TODO at top of file)

        if li < num_sage_layers - 1 or has_final_linear:
            h = z.astype(compute_dtype)

    if has_final_linear:
        # Only taken when ReLU sits between the last conv and the output Linear
        # (num_layers == 1); otherwise the Linear is folded into the last layer.
        w_out = layer_refs[3 * num_sage_layers][...]
        b_out = layer_refs[3 * num_sage_layers + 1][...]
        z = jnp.dot(h, w_out, preferred_element_type=jnp.float32) + b_out

    o_ref[...] = z.astype(o_ref.dtype)        # lane-dense (padded) output slab


def _full_spec(shape):
    # Whole-array block (single grid point); satisfies the (8,128) rule by
    # matching the full array dims.
    return pl.BlockSpec(shape, lambda: (0,) * len(shape))


# ------------------------------ JAX glue ----------------------------------- #

def _round_up(x, m):
    return ((x + m - 1) // m) * m


def _pad2d(x, rows, cols):
    r, c = x.shape
    return jnp.pad(x, ((0, rows - r), (0, cols - c)))


def _vmem_limit_bytes():
    """Generation-aware scoped-VMEM limit."""
    try:
        kind = jax.devices()[0].device_kind.lower()
    except Exception:  # pragma: no cover - defensive
        kind = ""
    if "v7" in kind:
        return 48 * 1024 * 1024       # 64 MiB physical on v7x -> leave headroom
    if any(g in kind for g in ("v4", "v5", "v6")):
        return 100 * 1024 * 1024      # 128 MiB physical on v4/v5e/v6e
    return 48 * 1024 * 1024           # unknown generation: conservative


def build_norm_adj_padded(edge_index, num_nodes, n_pad, aggr, dtype):
    """Dense message-passing operator built directly at padded size.

    A[dst, src] = #edges; rows mean-normalized for aggr='mean'.  Padded rows /
    columns stay zero, so padding never contaminates real-node results.
    """
    del num_nodes  # padded rows are zero; degree clip keeps them zero after /deg
    src = edge_index[0]
    dst = edge_index[1]
    a = jnp.zeros((n_pad, n_pad), jnp.float32)
    a = a.at[dst, src].add(1.0)
    if aggr == "mean":
        deg = jnp.clip(jnp.sum(a, axis=1, keepdims=True), 1.0, None)
        a = a / deg
    elif aggr == "sum":
        pass
    else:
        raise ValueError(f"unsupported aggr: {aggr}")
    return a.astype(dtype)


def init_params(key, in_dim, hidden_dim, embedding_dim, output_dim, num_layers):
    """Deterministic parameter init (glorot-ish scaled normals)."""
    params = {}
    ks = iter(jax.random.split(key, 4 * (num_layers + 1) + 2))

    def dense(k, fan_in, fan_out):
        scale = (2.0 / (fan_in + fan_out)) ** 0.5
        return scale * jax.random.normal(k, (fan_in, fan_out), jnp.float32)

    dims = []
    if num_layers == 1:
        dims.append((in_dim, embedding_dim))
    else:
        dims.append((in_dim, hidden_dim))
        for _ in range(num_layers - 2):
            dims.append((hidden_dim, hidden_dim))
        dims.append((hidden_dim, embedding_dim))

    sage = []
    for (fi, fo) in dims:
        w_l = dense(next(ks), fi, fo)
        w_r = dense(next(ks), fi, fo)
        b_l = 0.01 * jax.random.normal(next(ks), (fo,), jnp.float32)
        sage.append((w_l, w_r, b_l))
    params["sage"] = sage
    params["out_w"] = dense(next(ks), embedding_dim, output_dim)
    params["out_b"] = 0.01 * jax.random.normal(next(ks), (output_dim,), jnp.float32)
    return params


def graphsage2_forward(params, x, edge_index, *, num_nodes, sage_aggr,
                       compute_dtype=jnp.bfloat16):
    """Runs the full GraphSAGE2 forward in a single fused Pallas call.

    compute_dtype=jnp.float32 is the precision escape hatch (accumulation is
    always f32 via preferred_element_type).
    """
    sage = params["sage"]
    num_sage_layers = len(sage)
    in_dim = x.shape[1]
    out_dim = params["out_w"].shape[1]

    # Reference forward: ReLU(+dropout) after every SAGE layer except the last
    # when num_layers > 1; with num_layers == 1 the only layer IS followed by
    # ReLU before the output Linear.
    relu_flags = tuple(
        (li < num_sage_layers - 1) or (num_sage_layers == 1)
        for li in range(num_sage_layers)
    )
    # Fold the output Linear into the last SAGE layer only if nothing
    # nonlinear sits between them (documented constraint from the review).
    fold_final = not relu_flags[-1]

    # Pad node count to a lane multiple (MXU fill + lane-dense A columns) and
    # every feature dim to the 128-lane width. Padded rows/cols are zero, so
    # real-node results are unaffected; padding is sliced off at the end.
    n_pad = _round_up(max(num_nodes, SUBLANE), LANE)

    a_p = build_norm_adj_padded(edge_index, num_nodes, n_pad, sage_aggr,
                                compute_dtype)
    x_p = _pad2d(x, n_pad, _round_up(in_dim, LANE)).astype(compute_dtype)

    operands = [a_p, x_p]
    in_specs = [_full_spec(a_p.shape), _full_spec(x_p.shape)]

    flops = 0
    last_fo_p = None
    for li, (w_l, w_r, b_l) in enumerate(sage):
        if fold_final and li == num_sage_layers - 1:
            # Fold the final Linear into the last SAGE layer (f32, unpadded).
            w_l = w_l @ params["out_w"]
            w_r = w_r @ params["out_w"]
            b_l = b_l @ params["out_w"] + params["out_b"]
        fi, fo = w_l.shape
        fi_p, fo_p = _round_up(fi, LANE), _round_up(fo, LANE)
        w_l_p = _pad2d(w_l, fi_p, fo_p).astype(compute_dtype)
        w_r_p = _pad2d(w_r, fi_p, fo_p).astype(compute_dtype)
        b_p = _pad2d(b_l.reshape(1, fo), 1, fo_p)          # float32 bias row
        operands += [w_l_p, w_r_p, b_p]
        in_specs += [_full_spec(w_l_p.shape), _full_spec(w_r_p.shape),
                     _full_spec(b_p.shape)]
        flops += 2 * n_pad * n_pad * fi_p                  # aggregation A @ h
        flops += 2 * 2 * n_pad * fi_p * fo_p               # two projections
        last_fo_p = fo_p

    if not fold_final:
        ei, oi = params["out_w"].shape
        ei_p, oi_p = _round_up(ei, LANE), _round_up(oi, LANE)
        w_out_p = _pad2d(params["out_w"], ei_p, oi_p).astype(compute_dtype)
        b_out_p = _pad2d(params["out_b"].reshape(1, oi), 1, oi_p)
        operands += [w_out_p, b_out_p]
        in_specs += [_full_spec(w_out_p.shape), _full_spec(b_out_p.shape)]
        flops += 2 * n_pad * ei_p * oi_p
        out_cols = oi_p
    else:
        out_cols = last_fo_p

    bytes_accessed = sum(int(op.size) * op.dtype.itemsize for op in operands)
    bytes_accessed += n_pad * out_cols * 4

    kernel = functools.partial(
        _fused_graphsage_kernel,
        num_sage_layers=num_sage_layers,
        relu_flags=relu_flags,
        has_final_linear=not fold_final,
        compute_dtype=compute_dtype,
    )

    out_p = pl.pallas_call(
        kernel,
        out_shape=jax.ShapeDtypeStruct((n_pad, out_cols), jnp.float32),
        in_specs=in_specs,
        out_specs=_full_spec((n_pad, out_cols)),
        compiler_params=pltpu.CompilerParams(
            vmem_limit_bytes=_vmem_limit_bytes(),
        ),
        cost_estimate=pl.CostEstimate(
            flops=int(flops),
            transcendentals=0,
            bytes_accessed=int(bytes_accessed),
        ),
    )(*operands)

    return out_p[:num_nodes, :out_dim]


# ------------------------------- Main --------------------------------------- #

if __name__ == "__main__":
    # Small synthetic graph.
    N = 32          # number of nodes
    IN_DIM = 16     # input feature dim
    HIDDEN = 32
    EMBED = 32
    OUT = 8
    NUM_LAYERS = 2
    AGGR = "mean"
    E = 64          # number of directed edges

    key = jax.random.PRNGKey(0)
    k_x, k_e, k_p = jax.random.split(key, 3)

    x = jax.random.normal(k_x, (N, IN_DIM), jnp.float32)
    edge_index = jax.random.randint(k_e, (2, E), 0, N, dtype=jnp.int32)

    params = init_params(k_p, IN_DIM, HIDDEN, EMBED, OUT, NUM_LAYERS)

    fwd = jax.jit(
        functools.partial(graphsage2_forward, num_nodes=N, sage_aggr=AGGR)
    )
    out = fwd(params, x, edge_index)
    jax.block_until_ready(out)

    assert out.shape == (N, OUT), out.shape
    assert out.dtype == jnp.float32
    assert bool(jnp.all(jnp.isfinite(out)))

    print("KERNEL_OK")
</pallas_src>

<mosaic_0001>
module attributes {stable_mosaic.version = 11 : i64} {
  func.func private @main(%arg0: i32) attributes {dimension_semantics = [#tpu.dimension_semantics<core_parallel>], iteration_bounds = array<i64: 2>, tpu.core_type = #tpu.core_type<sc_scalar_subcore>, window_params = []} {
    return
  }
}

module attributes {stable_mosaic.version = 11 : i64} {
  func.func private @main(%arg0: i32) attributes {dimension_semantics = [#tpu.dimension_semantics<core_parallel>], iteration_bounds = array<i64: 2>, tpu.core_type = #tpu.core_type<sc_scalar_subcore>, window_params = []} {
    return
  }
}

module attributes {stable_mosaic.version = 11 : i64} {
  func.func @_fused_graphsage_kernel(%arg0: memref<128x128xbf16, #tpu.memory_space<vmem>>, %arg1: memref<128x128xbf16, #tpu.memory_space<vmem>>, %arg2: memref<128x128xbf16, #tpu.memory_space<vmem>>, %arg3: memref<128x128xbf16, #tpu.memory_space<vmem>>, %arg4: memref<1x128xf32, #tpu.memory_space<vmem>>, %arg5: memref<128x128xbf16, #tpu.memory_space<vmem>>, %arg6: memref<128x128xbf16, #tpu.memory_space<vmem>>, %arg7: memref<1x128xf32, #tpu.memory_space<vmem>>, %arg8: memref<128x128xf32, #tpu.memory_space<vmem>>) attributes {dimension_semantics = [], scalar_prefetch = 0 : i64, scratch_operands = 0 : i64, tpu.core_type = #tpu.core_type<tc>} {
    %c0 = arith.constant 0 : index
    %c0_0 = arith.constant 0 : index
    %0 = vector.load %arg0[%c0, %c0_0] : memref<128x128xbf16, #tpu.memory_space<vmem>>, vector<128x128xbf16>
    %c0_1 = arith.constant 0 : index
    %c0_2 = arith.constant 0 : index
    %1 = vector.load %arg1[%c0_1, %c0_2] : memref<128x128xbf16, #tpu.memory_space<vmem>>, vector<128x128xbf16>
    %c0_3 = arith.constant 0 : index
    %c0_4 = arith.constant 0 : index
    %2 = vector.load %arg2[%c0_3, %c0_4] : memref<128x128xbf16, #tpu.memory_space<vmem>>, vector<128x128xbf16>
    %c0_5 = arith.constant 0 : index
    %c0_6 = arith.constant 0 : index
    %3 = vector.load %arg3[%c0_5, %c0_6] : memref<128x128xbf16, #tpu.memory_space<vmem>>, vector<128x128xbf16>
    %c0_7 = arith.constant 0 : index
    %c0_8 = arith.constant 0 : index
    %4 = vector.load %arg4[%c0_7, %c0_8] : memref<1x128xf32, #tpu.memory_space<vmem>>, vector<1x128xf32>
    %cst = arith.constant dense<0.000000e+00> : vector<128x128xf32>
    %5 = tpu.matmul %0, %1, %cst {dimension_numbers = #tpu.dot_dimension_numbers<[1], [0], [0], [1], [0, 0, 1, 1], [], []>} : vector<128x128xbf16>, vector<128x128xbf16>, vector<128x128xf32> -> vector<128x128xf32>
    %6 = arith.truncf %5 : vector<128x128xf32> to vector<128x128xbf16>
    %cst_9 = arith.constant dense<0.000000e+00> : vector<128x128xf32>
    %7 = tpu.matmul %6, %2, %cst_9 {dimension_numbers = #tpu.dot_dimension_numbers<[1], [0], [0], [1], [0, 0, 1, 1], [], []>} : vector<128x128xbf16>, vector<128x128xbf16>, vector<128x128xf32> -> vector<128x128xf32>
    %cst_10 = arith.constant dense<0.000000e+00> : vector<128x128xf32>
    %8 = tpu.matmul %1, %3, %cst_10 {dimension_numbers = #tpu.dot_dimension_numbers<[1], [0], [0], [1], [0, 0, 1, 1], [], []>} : vector<128x128xbf16>, vector<128x128xbf16>, vector<128x128xf32> -> vector<128x128xf32>
    %9 = arith.addf %7, %8 : vector<128x128xf32>
    %10 = vector.broadcast %4 : vector<1x128xf32> to vector<128x128xf32>
    %11 = arith.addf %9, %10 : vector<128x128xf32>
    %cst_11 = arith.constant 0.000000e+00 : f32
    %12 = vector.broadcast %cst_11 : f32 to vector<128x128xf32>
    %13 = arith.maximumf %11, %12 : vector<128x128xf32>
    %14 = arith.truncf %13 : vector<128x128xf32> to vector<128x128xbf16>
    %c0_12 = arith.constant 0 : index
    %c0_13 = arith.constant 0 : index
    %15 = vector.load %arg5[%c0_12, %c0_13] : memref<128x128xbf16, #tpu.memory_space<vmem>>, vector<128x128xbf16>
    %c0_14 = arith.constant 0 : index
    %c0_15 = arith.constant 0 : index
    %16 = vector.load %arg6[%c0_14, %c0_15] : memref<128x128xbf16, #tpu.memory_space<vmem>>, vector<128x128xbf16>
    %c0_16 = arith.constant 0 : index
    %c0_17 = arith.constant 0 : index
    %17 = vector.load %arg7[%c0_16, %c0_17] : memref<1x128xf32, #tpu.memory_space<vmem>>, vector<1x128xf32>
    %cst_18 = arith.constant dense<0.000000e+00> : vector<128x128xf32>
    %18 = tpu.matmul %0, %14, %cst_18 {dimension_numbers = #tpu.dot_dimension_numbers<[1], [0], [0], [1], [0, 0, 1, 1], [], []>} : vector<128x128xbf16>, vector<128x128xbf16>, vector<128x128xf32> -> vector<128x128xf32>
    %19 = arith.truncf %18 : vector<128x128xf32> to vector<128x128xbf16>
    %cst_19 = arith.constant dense<0.000000e+00> : vector<128x128xf32>
    %20 = tpu.matmul %19, %15, %cst_19 {dimension_numbers = #tpu.dot_dimension_numbers<[1], [0], [0], [1], [0, 0, 1, 1], [], []>} : vector<128x128xbf16>, vector<128x128xbf16>, vector<128x128xf32> -> vector<128x128xf32>
    %cst_20 = arith.constant dense<0.000000e+00> : vector<128x128xf32>
    %21 = tpu.matmul %14, %16, %cst_20 {dimension_numbers = #tpu.dot_dimension_numbers<[1], [0], [0], [1], [0, 0, 1, 1], [], []>} : vector<128x128xbf16>, vector<128x128xbf16>, vector<128x128xf32> -> vector<128x128xf32>
    %22 = arith.addf %20, %21 : vector<128x128xf32>
    %23 = vector.broadcast %17 : vector<1x128xf32> to vector<128x128xf32>
    %24 = arith.addf %22, %23 : vector<128x128xf32>
    %c0_21 = arith.constant 0 : index
    %c0_22 = arith.constant 0 : index
    %25 = vector.load %arg8[%c0_21, %c0_22] : memref<128x128xf32, #tpu.memory_space<vmem>>, vector<128x128xf32>
    tpu.vector_store %arg8[%c0_21, %c0_22], %24 {strides = array<i32>} : memref<128x128xf32, #tpu.memory_space<vmem>>, vector<128x128xf32>,
    return
  }
}

</mosaic_0001>

<llo_original>
// kernel: graphsage2_forward.1
$region0: #{graphsage2_forward.1}
  #allocation0 [shape = 'u32[]', space=smem, size = 0x4, offset = 0x4, fixed_abs, tag = 'smem constant byte address 0x4 - core index']
  #allocation1 [shape = 'u32[144,128]{1,0:T(1,128)}', space=vmem, size = 0x12000, scoped, tag = 'internal scratch']
  %s0 = inlined_call_operand.vmem [shape: bf16[128,128], index: 0, kind: input, shape index: {}]
  %s1 = inlined_call_operand.vmem [shape: bf16[128,128], index: 1, kind: input, shape index: {}]
  %s2 = inlined_call_operand.vmem [shape: bf16[128,128], index: 2, kind: input, shape index: {}]
  %s3 = inlined_call_operand.vmem [shape: bf16[128,128], index: 3, kind: input, shape index: {}]
  %s4 = inlined_call_operand.vmem [shape: f32[1,128], index: 4, kind: input, shape index: {}]
  %s5 = inlined_call_operand.vmem [shape: bf16[128,128], index: 5, kind: input, shape index: {}]
  %s6 = inlined_call_operand.vmem [shape: bf16[128,128], index: 6, kind: input, shape index: {}]
  %s7 = inlined_call_operand.vmem [shape: f32[1,128], index: 7, kind: input, shape index: {}]
  %s8 = inlined_call_operand.vmem [shape: f32[128,128], index: 8, kind: output, shape index: {}]
  %s9 = sld [smem:[#allocation0]]
  $region42: #{graphsage2_forward.1} parent=0
    _
  %s11 = ssub.s32 1, %s9
  %s12 = scalar_select 0, %s11, %s9
  // Predicated region
  $region2: #{graphsage2_forward.1} parent=0 // pred_check
    _
  $region3: #{graphsage2_forward.1} parent=0 // pred_check_branch
    %14 = sbr.rel (0) target = $region5
  $region4: #{graphsage2_forward.1} parent=0 // pred_region
    _
  $region5: #{graphsage2_forward.1} parent=0 // pred_fallthru
    _
  // Predicated region
  $region6: #{graphsage2_forward.1} parent=0 // pred_check
    _
  $region7: #{graphsage2_forward.1} parent=0 // pred_check_branch
    %16 = sbr.rel (0) target = $region9
  $region8: #{graphsage2_forward.1} parent=0 // pred_region
    _
  $region9: #{graphsage2_forward.1} parent=0 // pred_fallthru
    _
  // Predicated region
  $region10: #{graphsage2_forward.1} parent=0 // pred_check
    _
  $region11: #{graphsage2_forward.1} parent=0 // pred_check_branch
    %18 = sbr.rel (0) target = $region13
  $region12: #{graphsage2_forward.1} parent=0 // pred_region
    _
  $region13: #{graphsage2_forward.1} parent=0 // pred_fallthru
    _
  // Predicated region
  $region14: #{graphsage2_forward.1} parent=0 // pred_check
    _
  $region15: #{graphsage2_forward.1} parent=0 // pred_check_branch
    %20 = sbr.rel (0) target = $region17
  $region16: #{graphsage2_forward.1} parent=0 // pred_region
    _
  $region17: #{graphsage2_forward.1} parent=0 // pred_fallthru
    _
  // Predicated region
  $region18: #{graphsage2_forward.1} parent=0 // pred_check
    _
  $region19: #{graphsage2_forward.1} parent=0 // pred_check_branch
    %22 = sbr.rel (0) target = $region21
  $region20: #{graphsage2_forward.1} parent=0 // pred_region
    _
  $region21: #{graphsage2_forward.1} parent=0 // pred_fallthru
    _
  // Predicated region
  $region22: #{graphsage2_forward.1} parent=0 // pred_check
    _
  $region23: #{graphsage2_forward.1} parent=0 // pred_check_branch
    %24 = sbr.rel (0) target = $region25
  $region24: #{graphsage2_forward.1} parent=0 // pred_region
    _
  $region25: #{graphsage2_forward.1} parent=0 // pred_fallthru
    _
  // Predicated region
  $region26: #{graphsage2_forward.1} parent=0 // pred_check
    _
  $region27: #{graphsage2_forward.1} parent=0 // pred_check_branch
    %26 = sbr.rel (0) target = $region29
  $region28: #{graphsage2_forward.1} parent=0 // pred_region
    _
  $region29: #{graphsage2_forward.1} parent=0 // pred_fallthru
    _
  // Predicated region
  $region30: #{graphsage2_forward.1} parent=0 // pred_check
    _
  $region31: #{graphsage2_forward.1} parent=0 // pred_check_branch
    %28 = sbr.rel (0) target = $region33
  $region32: #{graphsage2_forward.1} parent=0 // pred_region
    _
  $region33: #{graphsage2_forward.1} parent=0 // pred_fallthru
    _
  %v30 = vld [vmem:[%s0] sm:$0xf]
  %v31 = vld [vmem:[%s0 + $0x4] sm:$0xf]
  %v32 = vld [vmem:[%s0 + $0x8] sm:$0xf]
  %v33 = vld [vmem:[%s0 + $0xc] sm:$0xf]
  %v34 = vld [vmem:[%s0 + $0x10] sm:$0xf]
  %v35 = vld [vmem:[%s0 + $0x14] sm:$0xf]
  %v36 = vld [vmem:[%s0 + $0x18] sm:$0xf]
  %v37 = vld [vmem:[%s0 + $0x1c] sm:$0xf]
  %v38 = vld [vmem:[%s0 + $0x20] sm:$0xf]
  %v39 = vld [vmem:[%s0 + $0x24] sm:$0xf]
  %v40 = vld [vmem:[%s0 + $0x28] sm:$0xf]
  %v41 = vld [vmem:[%s0 + $0x2c] sm:$0xf]
  %v42 = vld [vmem:[%s0 + $0x30] sm:$0xf]
  %v43 = vld [vmem:[%s0 + $0x34] sm:$0xf]
  %v44 = vld [vmem:[%s0 + $0x38] sm:$0xf]
  %v45 = vld [vmem:[%s0 + $0x3c] sm:$0xf]
  %v46 = vld [vmem:[%s1] sm:$0xf]
  %v47 = vld [vmem:[%s1 + $0x4] sm:$0xf]
  %v48 = vld [vmem:[%s1 + $0x8] sm:$0xf]
  %v49 = vld [vmem:[%s1 + $0xc] sm:$0xf]
  %v50 = vld [vmem:[%s1 + $0x10] sm:$0xf]
  %v51 = vld [vmem:[%s1 + $0x14] sm:$0xf]
  %v52 = vld [vmem:[%s1 + $0x18] sm:$0xf]
  %v53 = vld [vmem:[%s1 + $0x1c] sm:$0xf]
  %v54 = vld [vmem:[%s1 + $0x20] sm:$0xf]
  %v55 = vld [vmem:[%s1 + $0x24] sm:$0xf]
  %v56 = vld [vmem:[%s1 + $0x28] sm:$0xf]
  %v57 = vld [vmem:[%s1 + $0x2c] sm:$0xf]
  %v58 = vld [vmem:[%s1 + $0x30] sm:$0xf]
  %v59 = vld [vmem:[%s1 + $0x34] sm:$0xf]
  %v60 = vld [vmem:[%s1 + $0x38] sm:$0xf]
  %v61 = vld [vmem:[%s1 + $0x3c] sm:$0xf]
  %v62 = vld [vmem:[%s2] sm:$0xf]
  %v63 = vld [vmem:[%s2 + $0x4] sm:$0xf]
  %v64 = vld [vmem:[%s2 + $0x8] sm:$0xf]
  %v65 = vld [vmem:[%s2 + $0xc] sm:$0xf]
  %v66 = vld [vmem:[%s2 + $0x10] sm:$0xf]
  %v67 = vld [vmem:[%s2 + $0x14] sm:$0xf]
  %v68 = vld [vmem:[%s2 + $0x18] sm:$0xf]
  %v69 = vld [vmem:[%s2 + $0x1c] sm:$0xf]
  %v70 = vld [vmem:[%s2 + $0x20] sm:$0xf]
  %v71 = vld [vmem:[%s2 + $0x24] sm:$0xf]
  %v72 = vld [vmem:[%s2 + $0x28] sm:$0xf]
  %v73 = vld [vmem:[%s2 + $0x2c] sm:$0xf]
  %v74 = vld [vmem:[%s2 + $0x30] sm:$0xf]
  %v75 = vld [vmem:[%s2 + $0x34] sm:$0xf]
  %v76 = vld [vmem:[%s2 + $0x38] sm:$0xf]
  %v77 = vld [vmem:[%s2 + $0x3c] sm:$0xf]
  %v78 = vld [vmem:[%s3] sm:$0xf]
  %v79 = vld [vmem:[%s3 + $0x4] sm:$0xf]
  %v80 = vld [vmem:[%s3 + $0x8] sm:$0xf]
  %v81 = vld [vmem:[%s3 + $0xc] sm:$0xf]
  %v82 = vld [vmem:[%s3 + $0x10] sm:$0xf]
  %v83 = vld [vmem:[%s3 + $0x14] sm:$0xf]
  %v84 = vld [vmem:[%s3 + $0x18] sm:$0xf]
  %v85 = vld [vmem:[%s3 + $0x1c] sm:$0xf]
  %v86 = vld [vmem:[%s3 + $0x20] sm:$0xf]
  %v87 = vld [vmem:[%s3 + $0x24] sm:$0xf]
  %v88 = vld [vmem:[%s3 + $0x28] sm:$0xf]
  %v89 = vld [vmem:[%s3 + $0x2c] sm:$0xf]
  %v90 = vld [vmem:[%s3 + $0x30] sm:$0xf]
  %v91 = vld [vmem:[%s3 + $0x34] sm:$0xf]
  %v92 = vld [vmem:[%s3 + $0x38] sm:$0xf]
  %v93 = vld [vmem:[%s3 + $0x3c] sm:$0xf]
  %v94 = vld [vmem:[%s4] sm:$0x1]
  %v111 = vunpack.c.l.b16 %v30
  %v112 = vunpack.c.l.b16 %v31
  %v113 = vunpack.c.l.b16 %v32
  %v114 = vunpack.c.l.b16 %v33
  %v115 = vunpack.c.l.b16 %v34
  %v116 = vunpack.c.l.b16 %v35
  %v117 = vunpack.c.l.b16 %v36
  %v118 = vunpack.c.l.b16 %v37
  %v119 = vunpack.c.l.b16 %v38
  %v120 = vunpack.c.l.b16 %v39
  %v121 = vunpack.c.l.b16 %v40
  %v122 = vunpack.c.l.b16 %v41
  %v123 = vunpack.c.l.b16 %v42
  %v124 = vunpack.c.l.b16 %v43
  %v125 = vunpack.c.l.b16 %v44
  %v126 = vunpack.c.l.b16 %v45
  %v127 = vpack.c.b16 %v112, %v111
  %v128 = vpack.c.b16 %v114, %v113
  %v129 = vpack.c.b16 %v116, %v115
  %v130 = vpack.c.b16 %v118, %v117
  %v131 = vpack.c.b16 %v120, %v119
  %v132 = vpack.c.b16 %v122, %v121
  %v133 = vpack.c.b16 %v124, %v123
  %v134 = vpack.c.b16 %v126, %v125
  %v159 = vunpack.c.l.b16 %v46
  %v160 = vunpack.c.l.b16 %v47
  %v161 = vunpack.c.l.b16 %v48
  %v162 = vunpack.c.l.b16 %v49
  %v163 = vunpack.c.l.b16 %v50
  %v164 = vunpack.c.l.b16 %v51
  %v165 = vunpack.c.l.b16 %v52
  %v166 = vunpack.c.l.b16 %v53
  %v167 = vunpack.c.l.b16 %v54
  %v168 = vunpack.c.l.b16 %v55
  %v169 = vunpack.c.l.b16 %v56
  %v170 = vunpack.c.l.b16 %v57
  %v171 = vunpack.c.l.b16 %v58
  %v172 = vunpack.c.l.b16 %v59
  %v173 = vunpack.c.l.b16 %v60
  %v174 = vunpack.c.l.b16 %v61
  %v175 = vpack.c.b16 %v160, %v159
  %v176 = vpack.c.b16 %v162, %v161
  %v177 = vpack.c.b16 %v164, %v163
  %v178 = vpack.c.b16 %v166, %v165
  %v179 = vpack.c.b16 %v168, %v167
  %v180 = vpack.c.b16 %v170, %v169
  %v181 = vpack.c.b16 %v172, %v171
  %v182 = vpack.c.b16 %v174, %v173
  %191 = vmatprep.subr.bf16.mxu0 0
  %192 = vmatpush1.bf16.msra.mxu0 %v175
  %193 = vmatprep.subr.bf16.mxu0 0
  %194 = vmatpush1.bf16.msra.mxu0 %v176
  %195 = vmatprep.subr.bf16.mxu0 0
  %196 = vmatpush1.bf16.msra.mxu0 %v177
  %197 = vmatprep.subr.bf16.mxu0 0
  %198 = vmatpush1.bf16.msra.mxu0 %v178
  %199 = vmatprep.subr.bf16.mxu0 0
  %200 = vmatpush1.bf16.msra.mxu0 %v179
  %201 = vmatprep.subr.bf16.mxu0 0
  %202 = vmatpush1.bf16.msra.mxu0 %v180
  %203 = vmatprep.subr.bf16.mxu0 0
  %204 = vmatpush1.bf16.msra.mxu0 %v181
  %205 = vmatprep.subr.bf16.mxu0 0
  %206 = vmatpush1.bf16.msra.mxu0 %v182
  %207 = vmatprep.subr.bf16.mxu0 0
  %208 = vmatpush1.bf16.msra.mxu0 0
  %209 = vmatprep.subr.bf16.mxu0 0
  %210 = vmatpush1.bf16.msra.mxu0 0
  %211 = vmatprep.subr.bf16.mxu0 0
  %212 = vmatpush1.bf16.msra.mxu0 0
  %213 = vmatprep.subr.bf16.mxu0 0
  %214 = vmatpush1.bf16.msra.mxu0 0
  %215 = vmatprep.subr.bf16.mxu0 0
  %216 = vmatpush1.bf16.msra.mxu0 0
  %217 = vmatprep.subr.bf16.mxu0 0
  %218 = vmatpush1.bf16.msra.mxu0 0
  %219 = vmatprep.subr.bf16.mxu0 0
  %220 = vmatpush1.bf16.msra.mxu0 0
  %221 = vmatprep.subr.bf16.mxu0 0
  %222 = vmatpush1.bf16.msra.mxu0 0
  %223 = vmatprep.mubr.bf16.mxu0 0
  %224 = vmatmul.mubr.bf16.gmra.mrb[0].mxu0 %v127
  %v225 = vpop.f32.mrb[0].mxu0
  %v226 = vadd.f32 0.0, %v225
  %v227 = vpop.f32.mrb[0].mxu0
  %v228 = vpop.f32.mrb[0].mxu0
  %v229 = vadd.f32 0.0, %v228
  %v230 = vpop.f32.mrb[0].mxu0
  %231 = vmatprep.mubr.bf16.mxu0 0
  %232 = vmatmul.mubr.bf16.gmra.mrb[0].mxu0 %v128
  %v233 = vpop.f32.mrb[0].mxu0
  %v234 = vadd.f32 0.0, %v233
  %v235 = vpop.f32.mrb[0].mxu0
  %v236 = vpop.f32.mrb[0].mxu0
  %v237 = vadd.f32 0.0, %v236
  %v238 = vpop.f32.mrb[0].mxu0
  %239 = vmatprep.mubr.bf16.mxu0 0
  %240 = vmatmul.mubr.bf16.gmra.mrb[0].mxu0 %v129
  %v241 = vpop.f32.mrb[0].mxu0
  %v242 = vadd.f32 0.0, %v241
  %v243 = vpop.f32.mrb[0].mxu0
  %v244 = vpop.f32.mrb[0].mxu0
  %v245 = vadd.f32 0.0, %v244
  %v246 = vpop.f32.mrb[0].mxu0
  %247 = vmatprep.mubr.bf16.mxu0 0
  %248 = vmatmul.mubr.bf16.gmra.mrb[0].mxu0 %v130
  %v249 = vpop.f32.mrb[0].mxu0
  %v250 = vadd.f32 0.0, %v249
  %v251 = vpop.f32.mrb[0].mxu0
  %v252 = vpop.f32.mrb[0].mxu0
  %v253 = vadd.f32 0.0, %v252
  %v254 = vpop.f32.mrb[0].mxu0
  %255 = vmatprep.mubr.bf16.mxu0 0
  %256 = vmatmul.mubr.bf16.gmra.mrb[0].mxu0 %v131
  %v257 = vpop.f32.mrb[0].mxu0
  %v258 = vadd.f32 0.0, %v257
  %v259 = vpop.f32.mrb[0].mxu0
  %v260 = vpop.f32.mrb[0].mxu0
  %v261 = vadd.f32 0.0, %v260
  %v262 = vpop.f32.mrb[0].mxu0
  %263 = vmatprep.mubr.bf16.mxu0 0
  %264 = vmatmul.mubr.bf16.gmra.mrb[0].mxu0 %v132
  %v265 = vpop.f32.mrb[0].mxu0
  %v266 = vadd.f32 0.0, %v265
  %v267 = vpop.f32.mrb[0].mxu0
  %v268 = vpop.f32.mrb[0].mxu0
  %v269 = vadd.f32 0.0, %v268
  %v270 = vpop.f32.mrb[0].mxu0
  %271 = vmatprep.mubr.bf16.mxu0 0
  %272 = vmatmul.mubr.bf16.gmra.mrb[0].mxu0 %v133
  %v273 = vpop.f32.mrb[0].mxu0
  %v274 = vadd.f32 0.0, %v273
  %v275 = vpop.f32.mrb[0].mxu0
  %v276 = vpop.f32.mrb[0].mxu0
  %v277 = vadd.f32 0.0, %v276
  %v278 = vpop.f32.mrb[0].mxu0
  %279 = vmatprep.mubr.bf16.mxu0 0
  %280 = vmatmul.mubr.bf16.gmra.mrb[0].mxu0 %v134
  %v281 = vpop.f32.mrb[0].mxu0
  %v282 = vadd.f32 0.0, %v281
  %v283 = vpop.f32.mrb[0].mxu0
  %v284 = vpop.f32.mrb[0].mxu0
  %v285 = vadd.f32 0.0, %v284
  %v286 = vpop.f32.mrb[0].mxu0
  %287 = vdwg.mxu0
  %v288 = vpack.c.bf16 %v229, %v226
  %v289 = vpack.c.bf16 %v237, %v234
  %v290 = vpack.c.bf16 %v245, %v242
  %v291 = vpack.c.bf16 %v253, %v250
  %v292 = vpack.c.bf16 %v261, %v258
  %v293 = vpack.c.bf16 %v269, %v266
  %v294 = vpack.c.bf16 %v277, %v274
  %v295 = vpack.c.bf16 %v285, %v282
  %v312 = vunpack.c.l.b16 %v78
  %v313 = vunpack.c.l.b16 %v79
  %v314 = vunpack.c.l.b16 %v80
  %v315 = vunpack.c.l.b16 %v81
  %v316 = vunpack.c.l.b16 %v82
  %v317 = vunpack.c.l.b16 %v83
  %v318 = vunpack.c.l.b16 %v84
  %v319 = vunpack.c.l.b16 %v85
  %v320 = vunpack.c.l.b16 %v86
  %v321 = vunpack.c.l.b16 %v87
  %v322 = vunpack.c.l.b16 %v88
  %v323 = vunpack.c.l.b16 %v89
  %v324 = vunpack.c.l.b16 %v90
  %v325 = vunpack.c.l.b16 %v91
  %v326 = vunpack.c.l.b16 %v92
  %v327 = vunpack.c.l.b16 %v93
  %v328 = vpack.c.b16 %v313, %v312
  %v329 = vpack.c.b16 %v315, %v314
  %v330 = vpack.c.b16 %v317, %v316
  %v331 = vpack.c.b16 %v319, %v318
  %v332 = vpack.c.b16 %v321, %v320
  %v333 = vpack.c.b16 %v323, %v322
  %v334 = vpack.c.b16 %v325, %v324
  %v335 = vpack.c.b16 %v327, %v326
  %344 = vmatprep.subr.bf16.mxu0 0
  %345 = vmatpush1.bf16.msra.mxu0 %v328
  %346 = vmatprep.subr.bf16.mxu0 0
  %347 = vmatpush1.bf16.msra.mxu0 %v329
  %348 = vmatprep.subr.bf16.mxu0 0
  %349 = vmatpush1.bf16.msra.mxu0 %v330
  %350 = vmatprep.subr.bf16.mxu0 0
  %351 = vmatpush1.bf16.msra.mxu0 %v331
  %352 = vmatprep.subr.bf16.mxu0 0
  %353 = vmatpush1.bf16.msra.mxu0 %v332
  %354 = vmatprep.subr.bf16.mxu0 0
  %355 = vmatpush1.bf16.msra.mxu0 %v333
  %356 = vmatprep.subr.bf16.mxu0 0
  %357 = vmatpush1.bf16.msra.mxu0 %v334
  %358 = vmatprep.subr.bf16.mxu0 0
  %359 = vmatpush1.bf16.msra.mxu0 %v335
  %360 = vmatprep.subr.bf16.mxu0 0
  %361 = vmatpush1.bf16.msra.mxu0 0
  %362 = vmatprep.subr.bf16.mxu0 0
  %363 = vmatpush1.bf16.msra.mxu0 0
  %364 = vmatprep.subr.bf16.mxu0 0
  %365 = vmatpush1.bf16.msra.mxu0 0
  %366 = vmatprep.subr.bf16.mxu0 0
  %367 = vmatpush1.bf16.msra.mxu0 0
  %368 = vmatprep.subr.bf16.mxu0 0
  %369 = vmatpush1.bf16.msra.mxu0 0
  %370 = vmatprep.subr.bf16.mxu0 0
  %371 = vmatpush1.bf16.msra.mxu0 0
  %372 = vmatprep.subr.bf16.mxu0 0
  %373 = vmatpush1.bf16.msra.mxu0 0
  %374 = vmatprep.subr.bf16.mxu0 0
  %375 = vmatpush1.bf16.msra.mxu0 0
  %376 = vmatprep.mubr.bf16.mxu0 0
  %377 = vmatmul.mubr.bf16.gmra.mrb[0].mxu0 %v175
  %v378 = vpop.f32.mrb[0].mxu0
  %v379 = vadd.f32 0.0, %v378
  %v380 = vpop.f32.mrb[0].mxu0
  %v381 = vpop.f32.mrb[0].mxu0
  %v382 = vadd.f32 0.0, %v381
  %v383 = vpop.f32.mrb[0].mxu0
  %384 = vmatprep.mubr.bf16.mxu0 0
  %385 = vmatmul.mubr.bf16.gmra.mrb[0].mxu0 %v176
  %v386 = vpop.f32.mrb[0].mxu0
  %v387 = vadd.f32 0.0, %v386
  %v388 = vpop.f32.mrb[0].mxu0
  %v389 = vpop.f32.mrb[0].mxu0
  %v390 = vadd.f32 0.0, %v389
  %v391 = vpop.f32.mrb[0].mxu0
  %392 = vmatprep.mubr.bf16.mxu0 0
  %393 = vmatmul.mubr.bf16.gmra.mrb[0].mxu0 %v177
  %v394 = vpop.f32.mrb[0].mxu0
  %v395 = vadd.f32 0.0, %v394
  %v396 = vpop.f32.mrb[0].mxu0
  %v397 = vpop.f32.mrb[0].mxu0
  %v398 = vadd.f32 0.0, %v397
  %v399 = vpop.f32.mrb[0].mxu0
  %400 = vmatprep.mubr.bf16.mxu0 0
  %401 = vmatmul.mubr.bf16.gmra.mrb[0].mxu0 %v178
  %v402 = vpop.f32.mrb[0].mxu0
  %v403 = vadd.f32 0.0, %v402
  %v404 = vpop.f32.mrb[0].mxu0
  %v405 = vpop.f32.mrb[0].mxu0
  %v406 = vadd.f32 0.0, %v405
  %v407 = vpop.f32.mrb[0].mxu0
  %408 = vmatprep.mubr.bf16.mxu0 0
  %409 = vmatmul.mubr.bf16.gmra.mrb[0].mxu0 %v179
  %v410 = vpop.f32.mrb[0].mxu0
  %v411 = vadd.f32 0.0, %v410
  %v412 = vpop.f32.mrb[0].mxu0
  %v413 = vpop.f32.mrb[0].mxu0
  %v414 = vadd.f32 0.0, %v413
  %v415 = vpop.f32.mrb[0].mxu0
  %416 = vmatprep.mubr.bf16.mxu0 0
  %417 = vmatmul.mubr.bf16.gmra.mrb[0].mxu0 %v180
  %v418 = vpop.f32.mrb[0].mxu0
  %v419 = vadd.f32 0.0, %v418
  %v420 = vpop.f32.mrb[0].mxu0
  %v421 = vpop.f32.mrb[0].mxu0
  %v422 = vadd.f32 0.0, %v421
  %v423 = vpop.f32.mrb[0].mxu0
  %424 = vmatprep.mubr.bf16.mxu0 0
  %425 = vmatmul.mubr.bf16.gmra.mrb[0].mxu0 %v181
  %v426 = vpop.f32.mrb[0].mxu0
  %v427 = vadd.f32 0.0, %v426
  %v428 = vpop.f32.mrb[0].mxu0
  %v429 = vpop.f32.mrb[0].mxu0
  %v430 = vadd.f32 0.0, %v429
  %v431 = vpop.f32.mrb[0].mxu0
  %432 = vmatprep.mubr.bf16.mxu0 0
  %433 = vmatmul.mubr.bf16.gmra.mrb[0].mxu0 %v182
  %v434 = vpop.f32.mrb[0].mxu0
  %v435 = vadd.f32 0.0, %v434
  %v436 = vpop.f32.mrb[0].mxu0
  %v437 = vpop.f32.mrb[0].mxu0
  %v438 = vadd.f32 0.0, %v437
  %v439 = vpop.f32.mrb[0].mxu0
  %440 = vdwg.mxu0
  %v457 = vunpack.c.l.b16 %v62
  %v458 = vunpack.c.l.b16 %v63
  %v459 = vunpack.c.l.b16 %v64
  %v460 = vunpack.c.l.b16 %v65
  %v461 = vunpack.c.l.b16 %v66
  %v462 = vunpack.c.l.b16 %v67
  %v463 = vunpack.c.l.b16 %v68
  %v464 = vunpack.c.l.b16 %v69
  %v465 = vunpack.c.l.b16 %v70
  %v466 = vunpack.c.l.b16 %v71
  %v467 = vunpack.c.l.b16 %v72
  %v468 = vunpack.c.l.b16 %v73
  %v469 = vunpack.c.l.b16 %v74
  %v470 = vunpack.c.l.b16 %v75
  %v471 = vunpack.c.l.b16 %v76
  %v472 = vunpack.c.l.b16 %v77
  %v473 = vpack.c.b16 %v458, %v457
  %v474 = vpack.c.b16 %v460, %v459
  %v475 = vpack.c.b16 %v462, %v461
  %v476 = vpack.c.b16 %v464, %v463
  %v477 = vpack.c.b16 %v466, %v465
  %v478 = vpack.c.b16 %v468, %v467
  %v479 = vpack.c.b16 %v470, %v469
  %v480 = vpack.c.b16 %v472, %v471
  %489 = vmatprep.subr.bf16.mxu0 0
  %490 = vmatpush1.bf16.msra.mxu0 %v473
  %491 = vmatprep.subr.bf16.mxu0 0
  %492 = vmatpush1.bf16.msra.mxu0 %v474
  %493 = vmatprep.subr.bf16.mxu0 0
  %494 = vmatpush1.bf16.msra.mxu0 %v475
  %495 = vmatprep.subr.bf16.mxu0 0
  %496 = vmatpush1.bf16.msra.mxu0 %v476
  %497 = vmatprep.subr.bf16.mxu0 0
  %498 = vmatpush1.bf16.msra.mxu0 %v477
  %499 = vmatprep.subr.bf16.mxu0 0
  %500 = vmatpush1.bf16.msra.mxu0 %v478
  %501 = vmatprep.subr.bf16.mxu0 0
  %502 = vmatpush1.bf16.msra.mxu0 %v479
  %503 = vmatprep.subr.bf16.mxu0 0
  %504 = vmatpush1.bf16.msra.mxu0 %v480
  %505 = vmatprep.subr.bf16.mxu0 0
  %506 = vmatpush1.bf16.msra.mxu0 0
  %507 = vmatprep.subr.bf16.mxu0 0
  %508 = vmatpush1.bf16.msra.mxu0 0
  %509 = vmatprep.subr.bf16.mxu0 0
  %510 = vmatpush1.bf16.msra.mxu0 0
  %511 = vmatprep.subr.bf16.mxu0 0
  %512 = vmatpush1.bf16.msra.mxu0 0
  %513 = vmatprep.subr.bf16.mxu0 0
  %514 = vmatpush1.bf16.msra.mxu0 0
  %515 = vmatprep.subr.bf16.mxu0 0
  %516 = vmatpush1.bf16.msra.mxu0 0
  %517 = vmatprep.subr.bf16.mxu0 0
  %518 = vmatpush1.bf16.msra.mxu0 0
  %519 = vmatprep.subr.bf16.mxu0 0
  %520 = vmatpush1.bf16.msra.mxu0 0
  %521 = vmatprep.mubr.bf16.mxu0 0
  %522 = vmatmul.mubr.bf16.gmra.mrb[0].mxu0 %v288
  %v523 = vpop.f32.mrb[0].mxu0
  %v524 = vadd.f32 %v379, %v523
  %v525 = vpop.f32.mrb[0].mxu0
  %v526 = vpop.f32.mrb[0].mxu0
  %v527 = vadd.f32 %v382, %v526
  %v528 = vpop.f32.mrb[0].mxu0
  %529 = vmatprep.mubr.bf16.mxu0 0
  %530 = vmatmul.mubr.bf16.gmra.mrb[0].mxu0 %v289
  %v531 = vpop.f32.mrb[0].mxu0
  %v532 = vadd.f32 %v387, %v531
  %v533 = vpop.f32.mrb[0].mxu0
  %v534 = vpop.f32.mrb[0].mxu0
  %v535 = vadd.f32 %v390, %v534
  %v536 = vpop.f32.mrb[0].mxu0
  %537 = vmatprep.mubr.bf16.mxu0 0
  %538 = vmatmul.mubr.bf16.gmra.mrb[0].mxu0 %v290
  %v539 = vpop.f32.mrb[0].mxu0
  %v540 = vadd.f32 %v395, %v539
  %v541 = vpop.f32.mrb[0].mxu0
  %v542 = vpop.f32.mrb[0].mxu0
  %v543 = vadd.f32 %v398, %v542
  %v544 = vpop.f32.mrb[0].mxu0
  %545 = vmatprep.mubr.bf16.mxu0 0
  %546 = vmatmul.mubr.bf16.gmra.mrb[0].mxu0 %v291
  %v547 = vpop.f32.mrb[0].mxu0
  %v548 = vadd.f32 %v403, %v547
  %v549 = vpop.f32.mrb[0].mxu0
  %v550 = vpop.f32.mrb[0].mxu0
  %v551 = vadd.f32 %v406, %v550
  %v552 = vpop.f32.mrb[0].mxu0
  %553 = vmatprep.mubr.bf16.mxu0 0
  %554 = vmatmul.mubr.bf16.gmra.mrb[0].mxu0 %v292
  %v555 = vpop.f32.mrb[0].mxu0
  %v556 = vadd.f32 %v411, %v555
  %v557 = vpop.f32.mrb[0].mxu0
  %v558 = vpop.f32.mrb[0].mxu0
  %v559 = vadd.f32 %v414, %v558
  %v560 = vpop.f32.mrb[0].mxu0
  %561 = vmatprep.mubr.bf16.mxu0 0
  %562 = vmatmul.mubr.bf16.gmra.mrb[0].mxu0 %v293
  %v563 = vpop.f32.mrb[0].mxu0
  %v564 = vadd.f32 %v419, %v563
  %v565 = vpop.f32.mrb[0].mxu0
  %v566 = vpop.f32.mrb[0].mxu0
  %v567 = vadd.f32 %v422, %v566
  %v568 = vpop.f32.mrb[0].mxu0
  %569 = vmatprep.mubr.bf16.mxu0 0
  %570 = vmatmul.mubr.bf16.gmra.mrb[0].mxu0 %v294
  %v571 = vpop.f32.mrb[0].mxu0
  %v572 = vadd.f32 %v427, %v571
  %v573 = vpop.f32.mrb[0].mxu0
  %v574 = vpop.f32.mrb[0].mxu0
  %v575 = vadd.f32 %v430, %v574
  %v576 = vpop.f32.mrb[0].mxu0
  %577 = vmatprep.mubr.bf16.mxu0 0
  %578 = vmatmul.mubr.bf16.gmra.mrb[0].mxu0 %v295
  %v579 = vpop.f32.mrb[0].mxu0
  %v580 = vadd.f32 %v435, %v579
  %v581 = vpop.f32.mrb[0].mxu0
  %v582 = vpop.f32.mrb[0].mxu0
  %v583 = vadd.f32 %v438, %v582
  %v584 = vpop.f32.mrb[0].mxu0
  %585 = vdwg.mxu0
  %v587 = vlaneseq
  %v588 = vshrl.u32 %v587, 7
  %v589 = vsub.s32 0, %v588
  %v590 = vrot.slane %v94, %v589
  %v592 = vadd.f32 %v524, %v590
  %v593 = vadd.f32 %v527, %v590
  %v594 = vadd.f32 %v532, %v590
  %v595 = vadd.f32 %v535, %v590
  %v596 = vadd.f32 %v540, %v590
  %v597 = vadd.f32 %v543, %v590
  %v598 = vadd.f32 %v548, %v590
  %v599 = vadd.f32 %v551, %v590
  %v600 = vadd.f32 %v556, %v590
  %v601 = vadd.f32 %v559, %v590
  %v602 = vadd.f32 %v564, %v590
  %v603 = vadd.f32 %v567, %v590
  %v604 = vadd.f32 %v572, %v590
  %v605 = vadd.f32 %v575, %v590
  %v606 = vadd.f32 %v580, %v590
  %v607 = vadd.f32 %v583, %v590
  %v608 = vmax.f32 %v592, 0.0
  %v609 = vmax.f32 %v593, 0.0
  %v610 = vmax.f32 %v594, 0.0
  %v611 = vmax.f32 %v595, 0.0
  %v612 = vmax.f32 %v596, 0.0
  %v613 = vmax.f32 %v597, 0.0
  %v614 = vmax.f32 %v598, 0.0
  %v615 = vmax.f32 %v599, 0.0
  %v616 = vmax.f32 %v600, 0.0
  %v617 = vmax.f32 %v601, 0.0
  %v618 = vmax.f32 %v602, 0.0
  %v619 = vmax.f32 %v603, 0.0
  %v620 = vmax.f32 %v604, 0.0
  %v621 = vmax.f32 %v605, 0.0
  %v622 = vmax.f32 %v606, 0.0
  %v623 = vmax.f32 %v607, 0.0
  %v624 = vpack.c.bf16 %v609, %v608
  %v625 = vpack.c.bf16 %v611, %v610
  %v626 = vpack.c.bf16 %v613, %v612
  %v627 = vpack.c.bf16 %v615, %v614
  %v628 = vpack.c.bf16 %v617, %v616
  %v629 = vpack.c.bf16 %v619, %v618
  %v630 = vpack.c.bf16 %v621, %v620
  %v631 = vpack.c.bf16 %v623, %v622
  %v632 = vld [vmem:[%s5] sm:$0xf]
  %v633 = vld [vmem:[%s5 + $0x4] sm:$0xf]
  %v634 = vld [vmem:[%s5 + $0x8] sm:$0xf]
  %v635 = vld [vmem:[%s5 + $0xc] sm:$0xf]
  %v636 = vld [vmem:[%s5 + $0x10] sm:$0xf]
  %v637 = vld [vmem:[%s5 + $0x14] sm:$0xf]
  %v638 = vld [vmem:[%s5 + $0x18] sm:$0xf]
  %v639 = vld [vmem:[%s5 + $0x1c] sm:$0xf]
  %v640 = vld [vmem:[%s5 + $0x20] sm:$0xf]
  %v641 = vld [vmem:[%s5 + $0x24] sm:$0xf]
  %v642 = vld [vmem:[%s5 + $0x28] sm:$0xf]
  %v643 = vld [vmem:[%s5 + $0x2c] sm:$0xf]
  %v644 = vld [vmem:[%s5 + $0x30] sm:$0xf]
  %v645 = vld [vmem:[%s5 + $0x34] sm:$0xf]
  %v646 = vld [vmem:[%s5 + $0x38] sm:$0xf]
  %v647 = vld [vmem:[%s5 + $0x3c] sm:$0xf]
  %v648 = vld [vmem:[%s6] sm:$0xf]
  %v649 = vld [vmem:[%s6 + $0x4] sm:$0xf]
  %v650 = vld [vmem:[%s6 + $0x8] sm:$0xf]
  %v651 = vld [vmem:[%s6 + $0xc] sm:$0xf]
  %v652 = vld [vmem:[%s6 + $0x10] sm:$0xf]
  %v653 = vld [vmem:[%s6 + $0x14] sm:$0xf]
  %v654 = vld [vmem:[%s6 + $0x18] sm:$0xf]
  %v655 = vld [vmem:[%s6 + $0x1c] sm:$0xf]
  %v656 = vld [vmem:[%s6 + $0x20] sm:$0xf]
  %v657 = vld [vmem:[%s6 + $0x24] sm:$0xf]
  %v658 = vld [vmem:[%s6 + $0x28] sm:$0xf]
  %v659 = vld [vmem:[%s6 + $0x2c] sm:$0xf]
  %v660 = vld [vmem:[%s6 + $0x30] sm:$0xf]
  %v661 = vld [vmem:[%s6 + $0x34] sm:$0xf]
  %v662 = vld [vmem:[%s6 + $0x38] sm:$0xf]
  %v663 = vld [vmem:[%s6 + $0x3c] sm:$0xf]
  %v664 = vld [vmem:[%s7] sm:$0x1]
  %665 = vmatprep.subr.bf16.mxu0 0
  %666 = vmatpush1.bf16.msra.mxu0 %v624
  %667 = vmatprep.subr.bf16.mxu0 0
  %668 = vmatpush1.bf16.msra.mxu0 %v625
  %669 = vmatprep.subr.bf16.mxu0 0
  %670 = vmatpush1.bf16.msra.mxu0 %v626
  %671 = vmatprep.subr.bf16.mxu0 0
  %672 = vmatpush1.bf16.msra.mxu0 %v627
  %673 = vmatprep.subr.bf16.mxu0 0
  %674 = vmatpush1.bf16.msra.mxu0 %v628
  %675 = vmatprep.subr.bf16.mxu0 0
  %676 = vmatpush1.bf16.msra.mxu0 %v629
  %677 = vmatprep.subr.bf16.mxu0 0
  %678 = vmatpush1.bf16.msra.mxu0 %v630
  %679 = vmatprep.subr.bf16.mxu0 0
  %680 = vmatpush1.bf16.msra.mxu0 %v631
  %681 = vmatprep.subr.bf16.mxu0 0
  %682 = vmatpush1.bf16.msra.mxu0 0
  %683 = vmatprep.subr.bf16.mxu0 0
  %684 = vmatpush1.bf16.msra.mxu0 0
  %685 = vmatprep.subr.bf16.mxu0 0
  %686 = vmatpush1.bf16.msra.mxu0 0
  %687 = vmatprep.subr.bf16.mxu0 0
  %688 = vmatpush1.bf16.msra.mxu0 0
  %689 = vmatprep.subr.bf16.mxu0 0
  %690 = vmatpush1.bf16.msra.mxu0 0
  %691 = vmatprep.subr.bf16.mxu0 0
  %692 = vmatpush1.bf16.msra.mxu0 0
  %693 = vmatprep.subr.bf16.mxu0 0
  %694 = vmatpush1.bf16.msra.mxu0 0
  %695 = vmatprep.subr.bf16.mxu0 0
  %696 = vmatpush1.bf16.msra.mxu0 0
  %697 = vmatprep.mubr.bf16.mxu0 0
  %698 = vmatmul.mubr.bf16.gmra.mrb[0].mxu0 %v127
  %v699 = vpop.f32.mrb[0].mxu0
  %v700 = vadd.f32 0.0, %v699
  %v701 = vpop.f32.mrb[0].mxu0
  %v702 = vpop.f32.mrb[0].mxu0
  %v703 = vadd.f32 0.0, %v702
  %v704 = vpop.f32.mrb[0].mxu0
  %705 = vmatprep.mubr.bf16.mxu0 0
  %706 = vmatmul.mubr.bf16.gmra.mrb[0].mxu0 %v128
  %v707 = vpop.f32.mrb[0].mxu0
  %v708 = vadd.f32 0.0, %v707
  %v709 = vpop.f32.mrb[0].mxu0
  %v710 = vpop.f32.mrb[0].mxu0
  %v711 = vadd.f32 0.0, %v710
  %v712 = vpop.f32.mrb[0].mxu0
  %713 = vmatprep.mubr.bf16.mxu0 0
  %714 = vmatmul.mubr.bf16.gmra.mrb[0].mxu0 %v129
  %v715 = vpop.f32.mrb[0].mxu0
  %v716 = vadd.f32 0.0, %v715
  %v717 = vpop.f32.mrb[0].mxu0
  %v718 = vpop.f32.mrb[0].mxu0
  %v719 = vadd.f32 0.0, %v718
  %v720 = vpop.f32.mrb[0].mxu0
  %721 = vmatprep.mubr.bf16.mxu0 0
  %722 = vmatmul.mubr.bf16.gmra.mrb[0].mxu0 %v130
  %v723 = vpop.f32.mrb[0].mxu0
  %v724 = vadd.f32 0.0, %v723
  %v725 = vpop.f32.mrb[0].mxu0
  %v726 = vpop.f32.mrb[0].mxu0
  %v727 = vadd.f32 0.0, %v726
  %v728 = vpop.f32.mrb[0].mxu0
  %729 = vmatprep.mubr.bf16.mxu0 0
  %730 = vmatmul.mubr.bf16.gmra.mrb[0].mxu0 %v131
  %v731 = vpop.f32.mrb[0].mxu0
  %v732 = vadd.f32 0.0, %v731
  %v733 = vpop.f32.mrb[0].mxu0
  %v734 = vpop.f32.mrb[0].mxu0
  %v735 = vadd.f32 0.0, %v734
  %v736 = vpop.f32.mrb[0].mxu0
  %737 = vmatprep.mubr.bf16.mxu0 0
  %738 = vmatmul.mubr.bf16.gmra.mrb[0].mxu0 %v132
  %v739 = vpop.f32.mrb[0].mxu0
  %v740 = vadd.f32 0.0, %v739
  %v741 = vpop.f32.mrb[0].mxu0
  %v742 = vpop.f32.mrb[0].mxu0
  %v743 = vadd.f32 0.0, %v742
  %v744 = vpop.f32.mrb[0].mxu0
  %745 = vmatprep.mubr.bf16.mxu0 0
  %746 = vmatmul.mubr.bf16.gmra.mrb[0].mxu0 %v133
  %v747 = vpop.f32.mrb[0].mxu0
  %v748 = vadd.f32 0.0, %v747
  %v749 = vpop.f32.mrb[0].mxu0
  %v750 = vpop.f32.mrb[0].mxu0
  %v751 = vadd.f32 0.0, %v750
  %v752 = vpop.f32.mrb[0].mxu0
  %753 = vmatprep.mubr.bf16.mxu0 0
  %754 = vmatmul.mubr.bf16.gmra.mrb[0].mxu0 %v134
  %v755 = vpop.f32.mrb[0].mxu0
  %v756 = vadd.f32 0.0, %v755
  %v757 = vpop.f32.mrb[0].mxu0
  %v758 = vpop.f32.mrb[0].mxu0
  %v759 = vadd.f32 0.0, %v758
  %v760 = vpop.f32.mrb[0].mxu0
  %761 = vdwg.mxu0
  %v762 = vpack.c.bf16 %v703, %v700
  %v763 = vpack.c.bf16 %v711, %v708
  %v764 = vpack.c.bf16 %v719, %v716
  %v765 = vpack.c.bf16 %v727, %v724
  %v766 = vpack.c.bf16 %v735, %v732
  %v767 = vpack.c.bf16 %v743, %v740
  %v768 = vpack.c.bf16 %v751, %v748
  %v769 = vpack.c.bf16 %v759, %v756
  %v786 = vunpack.c.l.b16 %v648
  %v787 = vunpack.c.l.b16 %v649
  %v788 = vunpack.c.l.b16 %v650
  %v789 = vunpack.c.l.b16 %v651
  %v790 = vunpack.c.l.b16 %v652
  %v791 = vunpack.c.l.b16 %v653
  %v792 = vunpack.c.l.b16 %v654
  %v793 = vunpack.c.l.b16 %v655
  %v794 = vunpack.c.l.b16 %v656
  %v795 = vunpack.c.l.b16 %v657
  %v796 = vunpack.c.l.b16 %v658
  %v797 = vunpack.c.l.b16 %v659
  %v798 = vunpack.c.l.b16 %v660
  %v799 = vunpack.c.l.b16 %v661
  %v800 = vunpack.c.l.b16 %v662
  %v801 = vunpack.c.l.b16 %v663
  %v802 = vpack.c.b16 %v787, %v786
  %v803 = vpack.c.b16 %v789, %v788
  %v804 = vpack.c.b16 %v791, %v790
  %v805 = vpack.c.b16 %v793, %v792
  %v806 = vpack.c.b16 %v795, %v794
  %v807 = vpack.c.b16 %v797, %v796
  %v808 = vpack.c.b16 %v799, %v798
  %v809 = vpack.c.b16 %v801, %v800
  %818 = vmatprep.subr.bf16.mxu0 0
  %819 = vmatpush1.bf16.msra.mxu0 %v802
  %820 = vmatprep.subr.bf16.mxu0 0
  %821 = vmatpush1.bf16.msra.mxu0 %v803
  %822 = vmatprep.subr.bf16.mxu0 0
  %823 = vmatpush1.bf16.msra.mxu0 %v804
  %824 = vmatprep.subr.bf16.mxu0 0
  %825 = vmatpush1.bf16.msra.mxu0 %v805
  %826 = vmatprep.subr.bf16.mxu0 0
  %827 = vmatpush1.bf16.msra.mxu0 %v806
  %828 = vmatprep.subr.bf16.mxu0 0
  %829 = vmatpush1.bf16.msra.mxu0 %v807
  %830 = vmatprep.subr.bf16.mxu0 0
  %831 = vmatpush1.bf16.msra.mxu0 %v808
  %832 = vmatprep.subr.bf16.mxu0 0
  %833 = vmatpush1.bf16.msra.mxu0 %v809
  %834 = vmatprep.subr.bf16.mxu0 0
  %835 = vmatpush1.bf16.msra.mxu0 0
  %836 = vmatprep.subr.bf16.mxu0 0
  %837 = vmatpush1.bf16.msra.mxu0 0
  %838 = vmatprep.subr.bf16.mxu0 0
  %839 = vmatpush1.bf16.msra.mxu0 0
  %840 = vmatprep.subr.bf16.mxu0 0
  %841 = vmatpush1.bf16.msra.mxu0 0
  %842 = vmatprep.subr.bf16.mxu0 0
  %843 = vmatpush1.bf16.msra.mxu0 0
  %844 = vmatprep.subr.bf16.mxu0 0
  %845 = vmatpush1.bf16.msra.mxu0 0
  %846 = vmatprep.subr.bf16.mxu0 0
  %847 = vmatpush1.bf16.msra.mxu0 0
  %848 = vmatprep.subr.bf16.mxu0 0
  %849 = vmatpush1.bf16.msra.mxu0 0
  %850 = vmatprep.mubr.bf16.mxu0 0
  %851 = vmatmul.mubr.bf16.gmra.mrb[0].mxu0 %v624
  %v852 = vpop.f32.mrb[0].mxu0
  %v853 = vadd.f32 0.0, %v852
  %v854 = vpop.f32.mrb[0].mxu0
  %v855 = vpop.f32.mrb[0].mxu0
  %v856 = vadd.f32 0.0, %v855
  %v857 = vpop.f32.mrb[0].mxu0
  %858 = vmatprep.mubr.bf16.mxu0 0
  %859 = vmatmul.mubr.bf16.gmra.mrb[0].mxu0 %v625
  %v860 = vpop.f32.mrb[0].mxu0
  %v861 = vadd.f32 0.0, %v860
  %v862 = vpop.f32.mrb[0].mxu0
  %v863 = vpop.f32.mrb[0].mxu0
  %v864 = vadd.f32 0.0, %v863
  %v865 = vpop.f32.mrb[0].mxu0
  %866 = vmatprep.mubr.bf16.mxu0 0
  %867 = vmatmul.mubr.bf16.gmra.mrb[0].mxu0 %v626
  %v868 = vpop.f32.mrb[0].mxu0
  %v869 = vadd.f32 0.0, %v868
  %v870 = vpop.f32.mrb[0].mxu0
  %v871 = vpop.f32.mrb[0].mxu0
  %v872 = vadd.f32 0.0, %v871
  %v873 = vpop.f32.mrb[0].mxu0
  %874 = vmatprep.mubr.bf16.mxu0 0
  %875 = vmatmul.mubr.bf16.gmra.mrb[0].mxu0 %v627
  %v876 = vpop.f32.mrb[0].mxu0
  %v877 = vadd.f32 0.0, %v876
  %v878 = vpop.f32.mrb[0].mxu0
  %v879 = vpop.f32.mrb[0].mxu0
  %v880 = vadd.f32 0.0, %v879
  %v881 = vpop.f32.mrb[0].mxu0
  %882 = vmatprep.mubr.bf16.mxu0 0
  %883 = vmatmul.mubr.bf16.gmra.mrb[0].mxu0 %v628
  %v884 = vpop.f32.mrb[0].mxu0
  %v885 = vadd.f32 0.0, %v884
  %v886 = vpop.f32.mrb[0].mxu0
  %v887 = vpop.f32.mrb[0].mxu0
  %v888 = vadd.f32 0.0, %v887
  %v889 = vpop.f32.mrb[0].mxu0
  %890 = vmatprep.mubr.bf16.mxu0 0
  %891 = vmatmul.mubr.bf16.gmra.mrb[0].mxu0 %v629
  %v892 = vpop.f32.mrb[0].mxu0
  %v893 = vadd.f32 0.0, %v892
  %v894 = vpop.f32.mrb[0].mxu0
  %v895 = vpop.f32.mrb[0].mxu0
  %v896 = vadd.f32 0.0, %v895
  %v897 = vpop.f32.mrb[0].mxu0
  %898 = vmatprep.mubr.bf16.mxu0 0
  %899 = vmatmul.mubr.bf16.gmra.mrb[0].mxu0 %v630
  %v900 = vpop.f32.mrb[0].mxu0
  %v901 = vadd.f32 0.0, %v900
  %v902 = vpop.f32.mrb[0].mxu0
  %v903 = vpop.f32.mrb[0].mxu0
  %v904 = vadd.f32 0.0, %v903
  %v905 = vpop.f32.mrb[0].mxu0
  %906 = vmatprep.mubr.bf16.mxu0 0
  %907 = vmatmul.mubr.bf16.gmra.mrb[0].mxu0 %v631
  %v908 = vpop.f32.mrb[0].mxu0
  %v909 = vadd.f32 0.0, %v908
  %v910 = vpop.f32.mrb[0].mxu0
  %v911 = vpop.f32.mrb[0].mxu0
  %v912 = vadd.f32 0.0, %v911
  %v913 = vpop.f32.mrb[0].mxu0
  %914 = vdwg.mxu0
  %v931 = vunpack.c.l.b16 %v632
  %v932 = vunpack.c.l.b16 %v633
  %v933 = vunpack.c.l.b16 %v634
  %v934 = vunpack.c.l.b16 %v635
  %v935 = vunpack.c.l.b16 %v636
  %v936 = vunpack.c.l.b16 %v637
  %v937 = vunpack.c.l.b16 %v638
  %v938 = vunpack.c.l.b16 %v639
  %v939 = vunpack.c.l.b16 %v640
  %v940 = vunpack.c.l.b16 %v641
  %v941 = vunpack.c.l.b16 %v642
  %v942 = vunpack.c.l.b16 %v643
  %v943 = vunpack.c.l.b16 %v644
  %v944 = vunpack.c.l.b16 %v645
  %v945 = vunpack.c.l.b16 %v646
  %v946 = vunpack.c.l.b16 %v647
  %v947 = vpack.c.b16 %v932, %v931
  %v948 = vpack.c.b16 %v934, %v933
  %v949 = vpack.c.b16 %v936, %v935
  %v950 = vpack.c.b16 %v938, %v937
  %v951 = vpack.c.b16 %v940, %v939
  %v952 = vpack.c.b16 %v942, %v941
  %v953 = vpack.c.b16 %v944, %v943
  %v954 = vpack.c.b16 %v946, %v945
  %963 = vmatprep.subr.bf16.mxu0 0
  %964 = vmatpush1.bf16.msra.mxu0 %v947
  %965 = vmatprep.subr.bf16.mxu0 0
  %966 = vmatpush1.bf16.msra.mxu0 %v948
  %967 = vmatprep.subr.bf16.mxu0 0
  %968 = vmatpush1.bf16.msra.mxu0 %v949
  %969 = vmatprep.subr.bf16.mxu0 0
  %970 = vmatpush1.bf16.msra.mxu0 %v950
  %971 = vmatprep.subr.bf16.mxu0 0
  %972 = vmatpush1.bf16.msra.mxu0 %v951
  %973 = vmatprep.subr.bf16.mxu0 0
  %974 = vmatpush1.bf16.msra.mxu0 %v952
  %975 = vmatprep.subr.bf16.mxu0 0
  %976 = vmatpush1.bf16.msra.mxu0 %v953
  %977 = vmatprep.subr.bf16.mxu0 0
  %978 = vmatpush1.bf16.msra.mxu0 %v954
  %979 = vmatprep.subr.bf16.mxu0 0
  %980 = vmatpush1.bf16.msra.mxu0 0
  %981 = vmatprep.subr.bf16.mxu0 0
  %982 = vmatpush1.bf16.msra.mxu0 0
  %983 = vmatprep.subr.bf16.mxu0 0
  %984 = vmatpush1.bf16.msra.mxu0 0
  %985 = vmatprep.subr.bf16.mxu0 0
  %986 = vmatpush1.bf16.msra.mxu0 0
  %987 = vmatprep.subr.bf16.mxu0 0
  %988 = vmatpush1.bf16.msra.mxu0 0
  %989 = vmatprep.subr.bf16.mxu0 0
  %990 = vmatpush1.bf16.msra.mxu0 0
  %991 = vmatprep.subr.bf16.mxu0 0
  %992 = vmatpush1.bf16.msra.mxu0 0
  %993 = vmatprep.subr.bf16.mxu0 0
  %994 = vmatpush1.bf16.msra.mxu0 0
  %995 = vmatprep.mubr.bf16.mxu0 0
  %996 = vmatmul.mubr.bf16.gmra.mrb[0].mxu0 %v762
  %v997 = vpop.f32.mrb[0].mxu0
  %v998 = vadd.f32 %v853, %v997
  %v999 = vpop.f32.mrb[0].mxu0
  %v1000 = vpop.f32.mrb[0].mxu0
  %v1001 = vadd.f32 %v856, %v1000
  %v1002 = vpop.f32.mrb[0].mxu0
  %1003 = vmatprep.mubr.bf16.mxu0 0
  %1004 = vmatmul.mubr.bf16.gmra.mrb[0].mxu0 %v763
  %v1005 = vpop.f32.mrb[0].mxu0
  %v1006 = vadd.f32 %v861, %v1005
  %v1007 = vpop.f32.mrb[0].mxu0
  %v1008 = vpop.f32.mrb[0].mxu0
  %v1009 = vadd.f32 %v864, %v1008
  %v1010 = vpop.f32.mrb[0].mxu0
  %1011 = vmatprep.mubr.bf16.mxu0 0
  %1012 = vmatmul.mubr.bf16.gmra.mrb[0].mxu0 %v764
  %v1013 = vpop.f32.mrb[0].mxu0
  %v1014 = vadd.f32 %v869, %v1013
  %v1015 = vpop.f32.mrb[0].mxu0
  %v1016 = vpop.f32.mrb[0].mxu0
  %v1017 = vadd.f32 %v872, %v1016
  %v1018 = vpop.f32.mrb[0].mxu0
  %1019 = vmatprep.mubr.bf16.mxu0 0
  %1020 = vmatmul.mubr.bf16.gmra.mrb[0].mxu0 %v765
  %v1021 = vpop.f32.mrb[0].mxu0
  %v1022 = vadd.f32 %v877, %v1021
  %v1023 = vpop.f32.mrb[0].mxu0
  %v1024 = vpop.f32.mrb[0].mxu0
  %v1025 = vadd.f32 %v880, %v1024
  %v1026 = vpop.f32.mrb[0].mxu0
  %1027 = vmatprep.mubr.bf16.mxu0 0
  %1028 = vmatmul.mubr.bf16.gmra.mrb[0].mxu0 %v766
  %v1029 = vpop.f32.mrb[0].mxu0
  %v1030 = vadd.f32 %v885, %v1029
  %v1031 = vpop.f32.mrb[0].mxu0
  %v1032 = vpop.f32.mrb[0].mxu0
  %v1033 = vadd.f32 %v888, %v1032
  %v1034 = vpop.f32.mrb[0].mxu0
  %1035 = vmatprep.mubr.bf16.mxu0 0
  %1036 = vmatmul.mubr.bf16.gmra.mrb[0].mxu0 %v767
  %v1037 = vpop.f32.mrb[0].mxu0
  %v1038 = vadd.f32 %v893, %v1037
  %v1039 = vpop.f32.mrb[0].mxu0
  %v1040 = vpop.f32.mrb[0].mxu0
  %v1041 = vadd.f32 %v896, %v1040
  %v1042 = vpop.f32.mrb[0].mxu0
  %1043 = vmatprep.mubr.bf16.mxu0 0
  %1044 = vmatmul.mubr.bf16.gmra.mrb[0].mxu0 %v768
  %v1045 = vpop.f32.mrb[0].mxu0
  %v1046 = vadd.f32 %v901, %v1045
  %v1047 = vpop.f32.mrb[0].mxu0
  %v1048 = vpop.f32.mrb[0].mxu0
  %v1049 = vadd.f32 %v904, %v1048
  %v1050 = vpop.f32.mrb[0].mxu0
  %1051 = vmatprep.mubr.bf16.mxu0 0
  %1052 = vmatmul.mubr.bf16.gmra.mrb[0].mxu0 %v769
  %v1053 = vpop.f32.mrb[0].mxu0
  %v1054 = vadd.f32 %v909, %v1053
  %v1055 = vpop.f32.mrb[0].mxu0
  %v1056 = vpop.f32.mrb[0].mxu0
  %v1057 = vadd.f32 %v912, %v1056
  %v1058 = vpop.f32.mrb[0].mxu0
  %1059 = vdwg.mxu0
  %v1061 = vlaneseq
  %v1062 = vshrl.u32 %v1061, 7
  %v1063 = vsub.s32 0, %v1062
  %v1064 = vrot.slane %v664, %v1063
  %v1066 = vadd.f32 %v998, %v1064
  %v1067 = vadd.f32 %v1001, %v1064
  %v1068 = vadd.f32 %v1006, %v1064
  %v1069 = vadd.f32 %v1009, %v1064
  %v1070 = vadd.f32 %v1014, %v1064
  %v1071 = vadd.f32 %v1017, %v1064
  %v1072 = vadd.f32 %v1022, %v1064
  %v1073 = vadd.f32 %v1025, %v1064
  %v1074 = vadd.f32 %v1030, %v1064
  %v1075 = vadd.f32 %v1033, %v1064
  %v1076 = vadd.f32 %v1038, %v1064
  %v1077 = vadd.f32 %v1041, %v1064
  %v1078 = vadd.f32 %v1046, %v1064
  %v1079 = vadd.f32 %v1049, %v1064
  %v1080 = vadd.f32 %v1054, %v1064
  %v1081 = vadd.f32 %v1057, %v1064
  %1082 = vst [vmem:[%s8] sm:$0xff] %v1066
  %1083 = vst [vmem:[%s8 + $0x8] sm:$0xff] %v1067
  %1084 = vst [vmem:[%s8 + $0x10] sm:$0xff] %v1068
  %1085 = vst [vmem:[%s8 + $0x18] sm:$0xff] %v1069
  %1086 = vst [vmem:[%s8 + $0x20] sm:$0xff] %v1070
  %1087 = vst [vmem:[%s8 + $0x28] sm:$0xff] %v1071
  %1088 = vst [vmem:[%s8 + $0x30] sm:$0xff] %v1072
  %1089 = vst [vmem:[%s8 + $0x38] sm:$0xff] %v1073
  %1090 = vst [vmem:[%s8 + $0x40] sm:$0xff] %v1074
  %1091 = vst [vmem:[%s8 + $0x48] sm:$0xff] %v1075
  %1092 = vst [vmem:[%s8 + $0x50] sm:$0xff] %v1076
  %1093 = vst [vmem:[%s8 + $0x58] sm:$0xff] %v1077
  %1094 = vst [vmem:[%s8 + $0x60] sm:$0xff] %v1078
  %1095 = vst [vmem:[%s8 + $0x68] sm:$0xff] %v1079
  %1096 = vst [vmem:[%s8 + $0x70] sm:$0xff] %v1080
  %1097 = vst [vmem:[%s8 + $0x78] sm:$0xff] %v1081
  // Predicated region
  $region34: #{graphsage2_forward.1} parent=0 // pred_check
    _
  $region35: #{graphsage2_forward.1} parent=0 // pred_check_branch
    %1099 = sbr.rel (0) target = $region37
  $region36: #{graphsage2_forward.1} parent=0 // pred_region
    _
  $region37: #{graphsage2_forward.1} parent=0 // pred_fallthru
    _
  // Predicated region
  $region38: #{graphsage2_forward.1} parent=0 // pred_check
    _
  $region39: #{graphsage2_forward.1} parent=0 // pred_check_branch
    %1101 = sbr.rel (0) target = $region41
  $region40: #{graphsage2_forward.1} parent=0 // pred_region
    _
  $region41: #{graphsage2_forward.1} parent=0 // pred_fallthru
    _

</llo_original>
